<compile_context>
chip_gen: v5e
topology: v5e:2x2
jax: 0.10.0
libtpu: 0.0.40
codegen_flags: <defaults>
</compile_context>

<pallas_src>
import functools

import jax
import jax.numpy as jnp
from jax.experimental import pallas as pl
from jax.experimental.pallas import tpu as pltpu


# ----------------------------------------------------------------------------- kernel
def _ese_kernel(add_maxpool, inv_n, x_ref, w_ref, b_ref, o_ref):
    x = x_ref[0]                                                    # (C, N) f32

    # squeeze: global mean over spatial positions (cross-lane reduce -> XLU slot,
    # overlaps with the VPU/MXU work and the next tile's DMA)
    x_se = jnp.sum(x, axis=-1, keepdims=True) * inv_n               # (C, 1)
    if add_maxpool:
        x_se = 0.5 * x_se + 0.5 * jnp.max(x, axis=-1, keepdims=True)

    # excite: 1x1 conv on the squeezed (C, 1) vector == one tiny matvec + bias
    fc = jnp.dot(w_ref[...], x_se,
                 preferred_element_type=jnp.float32) + b_ref[...]   # (C, 1)

    # hard_sigmoid gate (timm default): relu6(x + 3) / 6 -- multiply by const, no div
    gate = jnp.minimum(jnp.maximum(fc + 3.0, 0.0), 6.0) * (1.0 / 6.0)  # (C, 1)

    # re-scale: per-channel gate broadcast across all N spatial positions (VPU),
    # written back as one lane-dense full-width store.
    o_ref[0] = (x * gate).astype(o_ref.dtype)


# --------------------------------------------------------------------------- wrapper
def effective_se_forward(x, fc_w, fc_b, add_maxpool=False):
    """Pallas implementation of EffectiveSE.forward (gate_layer='hard_sigmoid').

    x:     (B, C, H, W)  NCHW float32
    fc_w:  (C, C, 1, 1)  1x1 conv weight
    fc_b:  (C,)          conv bias
    returns (B, C, H, W)
    """
    # TODO(synk): only the default 'hard_sigmoid' gate of create_act_layer is implemented.
    B, C, H, W = x.shape
    N = H * W

    x_flat = x.reshape(B, C, N)           # NCHW -> (B, C, N): pure reshape, no copy
    w = fc_w[:, :, 0, 0]                  # (C_out, C_in)
    b = fc_b.reshape(C, 1)                # (C, 1) so the bias add broadcasts in-kernel

    # advisory cost hint for XLA's scheduler around the custom call
    cost = pl.CostEstimate(
        flops=int(B * (2 * C * N + 2 * C * C)),
        transcendentals=0,
        bytes_accessed=int(2 * B * C * N * 4 + C * C * 4 + C * 4),
    )

    out = pl.pallas_call(
        functools.partial(_ese_kernel, add_maxpool, 1.0 / N),
        out_shape=jax.ShapeDtypeStruct((B, C, N), x.dtype),
        grid=(B,),
        in_specs=[
            pl.BlockSpec((1, C, N), lambda i: (i, 0, 0)),   # x tile, lane dim = N
            pl.BlockSpec((C, C), lambda i: (0, 0)),         # fc weight (constant block)
            pl.BlockSpec((C, 1), lambda i: (0, 0)),         # fc bias   (constant block)
        ],
        out_specs=pl.BlockSpec((1, C, N), lambda i: (i, 0, 0)),
        compiler_params=pltpu.CompilerParams(
            dimension_semantics=("parallel",)),
        cost_estimate=cost,
    )(x_flat, w, b)

    return out.reshape(B, C, H, W)


# ------------------------------------------------------------------ pure-JAX reference
def effective_se_reference(x, fc_w, fc_b, add_maxpool=False):
    x_se = jnp.mean(x, axis=(2, 3), keepdims=True)                     # (B, C, 1, 1)
    if add_maxpool:
        x_se = 0.5 * x_se + 0.5 * jnp.max(x, axis=(2, 3), keepdims=True)
    fc = jnp.einsum('bchw,oc->bohw', x_se, fc_w[:, :, 0, 0]) \
        + fc_b[None, :, None, None]
    gate = jnp.clip((fc + 3.0) / 6.0, 0.0, 1.0)                        # hard_sigmoid
    return x * gate


# ------------------------------------------------------------------------------- main
if __name__ == "__main__":
    key = jax.random.PRNGKey(0)
    B, C, H, W = 2, 64, 16, 16
    ks = jax.random.split(key, 3)

    x = jax.random.normal(ks[0], (B, C, H, W), dtype=jnp.float32)
    fc_w = 0.2 * jax.random.normal(ks[1], (C, C, 1, 1), dtype=jnp.float32)
    fc_b = 0.1 * jax.random.normal(ks[2], (C,), dtype=jnp.float32)

    # add_maxpool = False (module default)
    out = effective_se_forward(x, fc_w, fc_b, add_maxpool=False)
    out = jax.block_until_ready(out)
    ref = effective_se_reference(x, fc_w, fc_b, add_maxpool=False)
    assert out.shape == (B, C, H, W)
    err = float(jnp.max(jnp.abs(out - ref)))
    if err > 1e-4:
        raise AssertionError(f"add_maxpool=False mismatch, max abs err = {err}")

    # add_maxpool = True
    out_m = effective_se_forward(x, fc_w, fc_b, add_maxpool=True)
    out_m = jax.block_until_ready(out_m)
    ref_m = effective_se_reference(x, fc_w, fc_b, add_maxpool=True)
    err_m = float(jnp.max(jnp.abs(out_m - ref_m)))
    if err_m > 1e-4:
        raise AssertionError(f"add_maxpool=True mismatch, max abs err = {err_m}")

    print("KERNEL_OK")
</pallas_src>

<mosaic_0001>
module attributes {stable_mosaic.version = 11 : i64} {
  func.func @_ese_kernel(%arg0: i32, %arg1: memref<1x64x256xf32, #tpu.memory_space<vmem>>, %arg2: memref<64x64xf32, #tpu.memory_space<vmem>>, %arg3: memref<64x1xf32, #tpu.memory_space<vmem>>, %arg4: memref<1x64x256xf32, #tpu.memory_space<vmem>>) attributes {dimension_semantics = [#tpu.dimension_semantics<parallel>], iteration_bounds = array<i64: 2>, scalar_prefetch = 0 : i64, scratch_operands = 0 : i64, tpu.core_type = #tpu.core_type<tc>, window_params = [{transform_indices = @transform_0, window_bounds = array<i64: 1, 64, 256>}, {pipeline_mode = #tpu.pipeline_mode<synchronous>, transform_indices = @transform_1, window_bounds = array<i64: 64, 64>}, {pipeline_mode = #tpu.pipeline_mode<synchronous>, transform_indices = @transform_2, window_bounds = array<i64: 64, 1>}, {transform_indices = @transform_3, window_bounds = array<i64: 1, 64, 256>}]} {
    %c0 = arith.constant 0 : index
    %c0_0 = arith.constant 0 : index
    %c0_1 = arith.constant 0 : index
    %0 = vector.load %arg1[%c0, %c0_0, %c0_1] : memref<1x64x256xf32, #tpu.memory_space<vmem>>, vector<1x64x256xf32>
    %1 = vector.shape_cast %0 : vector<1x64x256xf32> to vector<64x256xf32>
    %cst = arith.constant dense<0.000000e+00> : vector<64xf32>
    %2 = vector.multi_reduction <add>, %1, %cst [1] : vector<64x256xf32> to vector<64xf32>
    %3 = vector.shape_cast %2 : vector<64xf32> to vector<64x1xf32>
    %cst_2 = arith.constant 3.906250e-03 : f32
    %4 = vector.broadcast %cst_2 : f32 to vector<64x1xf32>
    %5 = arith.mulf %3, %4 : vector<64x1xf32>
    %c0_3 = arith.constant 0 : index
    %c0_4 = arith.constant 0 : index
    %6 = vector.load %arg2[%c0_3, %c0_4] : memref<64x64xf32, #tpu.memory_space<vmem>>, vector<64x64xf32>
    %cst_5 = arith.constant dense<0.000000e+00> : vector<64x1xf32>
    %7 = tpu.matmul %6, %5, %cst_5 {dimension_numbers = #tpu.dot_dimension_numbers<[1], [0], [0], [1], [0, 0, 1, 1], [], []>} : vector<64x64xf32>, vector<64x1xf32>, vector<64x1xf32> -> vector<64x1xf32>
    %c0_6 = arith.constant 0 : index
    %c0_7 = arith.constant 0 : index
    %8 = vector.load %arg3[%c0_6, %c0_7] : memref<64x1xf32, #tpu.memory_space<vmem>>, vector<64x1xf32>
    %9 = arith.addf %7, %8 : vector<64x1xf32>
    %cst_8 = arith.constant 3.000000e+00 : f32
    %10 = vector.broadcast %cst_8 : f32 to vector<64x1xf32>
    %11 = arith.addf %9, %10 : vector<64x1xf32>
    %cst_9 = arith.constant 0.000000e+00 : f32
    %12 = vector.broadcast %cst_9 : f32 to vector<64x1xf32>
    %13 = arith.maximumf %11, %12 : vector<64x1xf32>
    %cst_10 = arith.constant 6.000000e+00 : f32
    %14 = vector.broadcast %cst_10 : f32 to vector<64x1xf32>
    %15 = arith.minimumf %13, %14 : vector<64x1xf32>
    %cst_11 = arith.constant 0.166666672 : f32
    %16 = vector.broadcast %cst_11 : f32 to vector<64x1xf32>
    %17 = arith.mulf %15, %16 : vector<64x1xf32>
    %18 = vector.broadcast %17 : vector<64x1xf32> to vector<64x256xf32>
    %19 = arith.mulf %1, %18 : vector<64x256xf32>
    %c0_12 = arith.constant 0 : index
    %c0_13 = arith.constant 0 : index
    %c0_14 = arith.constant 0 : index
    %20 = vector.load %arg4[%c0_12, %c0_13, %c0_14] : memref<1x64x256xf32, #tpu.memory_space<vmem>>, vector<1x64x256xf32>
    %21 = vector.shape_cast %20 : vector<1x64x256xf32> to vector<64x256xf32>
    %22 = vector.shape_cast %19 : vector<64x256xf32> to vector<1x64x256xf32>
    tpu.vector_store %arg4[%c0_12, %c0_13, %c0_14], %22 {strides = array<i32>} : memref<1x64x256xf32, #tpu.memory_space<vmem>>, vector<1x64x256xf32>,
    return
  }
  func.func @transform_0(%arg0: i32) -> (i32, i32, i32) {
    %c0_i32 = arith.constant 0 : i32
    %c0_i32_0 = arith.constant 0 : i32
    %c0_i32_1 = arith.constant 0 : i32
    return %arg0, %c0_i32, %c0_i32_0 : i32, i32, i32
  }
  func.func @transform_1(%arg0: i32) -> (i32, i32) {
    %c0_i32 = arith.constant 0 : i32
    %c0_i32_0 = arith.constant 0 : i32
    %c0_i32_1 = arith.constant 0 : i32
    return %c0_i32, %c0_i32_0 : i32, i32
  }
  func.func @transform_2(%arg0: i32) -> (i32, i32) {
    %c0_i32 = arith.constant 0 : i32
    %c0_i32_0 = arith.constant 0 : i32
    %c0_i32_1 = arith.constant 0 : i32
    return %c0_i32, %c0_i32_0 : i32, i32
  }
  func.func @transform_3(%arg0: i32) -> (i32, i32, i32) {
    %c0_i32 = arith.constant 0 : i32
    %c0_i32_0 = arith.constant 0 : i32
    %c0_i32_1 = arith.constant 0 : i32
    return %arg0, %c0_i32, %c0_i32_0 : i32, i32, i32
  }
}

</mosaic_0001>

<llo_original>
// kernel: tpu_custom_call.1
$region0: #{tpu_custom_call.1}
  #allocation0 [shape = 'u32[]', space=smem, size = 0x4, offset = 0x4, fixed_abs, tag = 'smem constant byte address 0x4 - core index']
  #allocation1 [shape = 'u32[72,128]{1,0:T(1,128)}', space=vmem, size = 0x9000, scoped, tag = 'internal scratch']
  %s0 = inlined_call_operand.hbm [shape: f32[2,64,256], index: 0, kind: input, shape index: {}]
  %s1 = inlined_call_operand.vmem [shape: f32[64,64], index: 1, kind: input, shape index: {}]
  %s2 = inlined_call_operand.vmem [shape: f32[64,1], index: 2, kind: input, shape index: {}]
  %s3 = inlined_call_operand.hbm [shape: f32[2,64,256], index: 3, kind: output, shape index: {}]
  %s4 = sld [smem:[#allocation0]]
  $region49: #{tpu_custom_call.1} parent=0
    _
  %s6 = ssub.s32 1, %s4
  %s7 = scalar_select 0, %s6, %s4
  $region1: #{tpu_custom_call.1} parent=0
    #allocation2 [shape = 'u8[131072]{0}', space=vmem, size = 0x20000, scoped, tag = 'input window, operand 0']
    #allocation3 [shape = 's32[2]{0}', space=sflag, size = 0x8, scoped, tag = 'scoped memory for tpu_custom_call.1']
    #allocation4 [shape = 's32[2]{0}', space=sflag, size = 0x8, scoped, tag = 'scoped memory for tpu_custom_call.1']
    #allocation5 [shape = 'u8[131072]{0}', space=vmem, size = 0x20000, scoped, tag = 'output window, operand 0']
    %8 = vsyncpa [#allocation3], 0
    %s9 = scalar_lea.sflag [#allocation3], 1
    %10 = vsyncpa %s9, 0
    %11 = vsyncpa [#allocation4], 0
    %s12 = scalar_lea.sflag [#allocation4], 1
    %13 = vsyncpa %s12, 0
    loop: start=0, step=1, limit=4
    $region2: #{tpu_custom_call.1} parent=1 // loop_pre_header
      _
    $region3: #{tpu_custom_call.1} parent=1 // loop_header
      %s15 = sphi 0, %s19
      %p16 = scmp.ge.s32.totalorder %s15, 4
      %s25 = sphi 0, %s27
      %s28 = sphi 0, %s25
      %s29 = sphi 0, %s28
      %s45 = sphi 0, %s29
      %s49 = sphi 0, %s49
      %s51 = sphi 0, %s49
      %s52 = sphi 0, %s51
      %s66 = sphi 0, %s52
      %s70 = sphi 0, %s70
      %s72 = sphi 0, %s70
      %s73 = sphi 0, %s72
      %s87 = sphi 0, %s73
      %s93 = sphi 0, %s95
      %s96 = sphi 0, %s93
      %s97 = sphi 0, %s96
      %s113 = sphi 0, %s97
    $region4: #{tpu_custom_call.1} parent=1 // loop_header_branch
      %18 = sbr.rel (%p16) target = $region8
    $region5: #{tpu_custom_call.1} parent=1 // loop_body
      %s20 = ssub.s32 %s15, 1
      %s21 = ssub.s32 %s15, 2
      %s22 = sadd.s32 %s15, 1
      %s23 = ssub.s32 %s15, %s22
      %p24 = scmp.eq.s32.totalorder %s23, 0
      %s26 = sadd.s32 %s25, 1
      %s27 = scalar_select %p24, %s25, %s26
      %p30 = pneg %p24
      %p31 = scmp.eq.s32.totalorder %s15, 1
      %p32 = por %p30, %p31
      %p33 = scmp.ne.s32.totalorder %s25, %s28
      %p34 = scmp.eq.s32.totalorder %s15, 0
      %p35 = por %p33, %p34
      %p36 = scmp.ne.s32.totalorder %s25, %s28
      %p37 = scmp.eq.s32.totalorder %s20, 1
      %p38 = por %p36, %p37
      %p39 = scmp.ne.s32.totalorder %s28, %s29
      %p40 = scmp.eq.s32.totalorder %s20, 0
      %p41 = por %p39, %p40
      %p42 = scmp.ne.s32.totalorder %s28, %s29
      %p43 = scmp.eq.s32.totalorder %s21, 1
      %p44 = por %p42, %p43
      %p46 = scmp.ne.s32.totalorder %s29, %s45
      %p47 = scmp.eq.s32.totalorder %s21, 0
      %p48 = por %p46, %p47
      %s50 = sadd.s32 %s49, 1
      %p53 = scmp.eq.s32.totalorder %s15, 1
      %p54 = scmp.ne.s32.totalorder %s49, %s51
      %p55 = scmp.eq.s32.totalorder %s15, 0
      %p56 = por %p54, %p55
      %p57 = scmp.ne.s32.totalorder %s49, %s51
      %p58 = scmp.eq.s32.totalorder %s20, 1
      %p59 = por %p57, %p58
      %p60 = scmp.ne.s32.totalorder %s51, %s52
      %p61 = scmp.eq.s32.totalorder %s20, 0
      %p62 = por %p60, %p61
      %p63 = scmp.ne.s32.totalorder %s51, %s52
      %p64 = scmp.eq.s32.totalorder %s21, 1
      %p65 = por %p63, %p64
      %p67 = scmp.ne.s32.totalorder %s52, %s66
      %p68 = scmp.eq.s32.totalorder %s21, 0
      %p69 = por %p67, %p68
      %s71 = sadd.s32 %s70, 1
      %p74 = scmp.eq.s32.totalorder %s15, 1
      %p75 = scmp.ne.s32.totalorder %s70, %s72
      %p76 = scmp.eq.s32.totalorder %s15, 0
      %p77 = por %p75, %p76
      %p78 = scmp.ne.s32.totalorder %s70, %s72
      %p79 = scmp.eq.s32.totalorder %s20, 1
      %p80 = por %p78, %p79
      %p81 = scmp.ne.s32.totalorder %s72, %s73
      %p82 = scmp.eq.s32.totalorder %s20, 0
      %p83 = por %p81, %p82
      %p84 = scmp.ne.s32.totalorder %s72, %s73
      %p85 = scmp.eq.s32.totalorder %s21, 1
      %p86 = por %p84, %p85
      %p88 = scmp.ne.s32.totalorder %s73, %s87
      %p89 = scmp.eq.s32.totalorder %s21, 0
      %p90 = por %p88, %p89
      %s91 = ssub.s32 %s15, %s22
      %p92 = scmp.eq.s32.totalorder %s91, 0
      %s94 = sadd.s32 %s93, 1
      %s95 = scalar_select %p92, %s93, %s94
      %p98 = pneg %p92
      %p99 = scmp.eq.s32.totalorder %s15, 1
      %p100 = por %p98, %p99
      %p101 = scmp.ne.s32.totalorder %s93, %s96
      %p102 = scmp.eq.s32.totalorder %s15, 0
      %p103 = por %p101, %p102
      %p104 = scmp.ne.s32.totalorder %s93, %s96
      %p105 = scmp.eq.s32.totalorder %s20, 1
      %p106 = por %p104, %p105
      %p107 = scmp.ne.s32.totalorder %s96, %s97
      %p108 = scmp.eq.s32.totalorder %s20, 0
      %p109 = por %p107, %p108
      %p110 = scmp.ne.s32.totalorder %s96, %s97
      %p111 = scmp.eq.s32.totalorder %s21, 1
      %p112 = por %p110, %p111
      %p114 = scmp.ne.s32.totalorder %s97, %s113
      %p115 = scmp.eq.s32.totalorder %s21, 0
      %p116 = por %p114, %p115
      %p117 = scmp.le.s32.totalorder 1, %s15
      %p118 = scmp.lt.s32.totalorder %s15, 3
      %p119 = pnand %p117, %p118
      %p120 = pneg %p119
      // Predicated region
      $region9: #{tpu_custom_call.1} parent=5 // pred_check
        _
      $region10: #{tpu_custom_call.1} parent=5 // pred_check_branch
        %122 = sbr.rel (%p119) target = $region12
      $region11: #{tpu_custom_call.1} parent=5 // pred_region
        %s123 = ssub.s32 %s15, 1
        // Predicated region
        $region13: #{tpu_custom_call.1} parent=11 // pred_check
          %p124 = pneg %p62
        $region14: #{tpu_custom_call.1} parent=11 // pred_check_branch
          %126 = sbr.rel (%p124) target = $region16
        $region15: #{tpu_custom_call.1} parent=11 // pred_region
          _
        $region16: #{tpu_custom_call.1} parent=11 // pred_fallthru
          _
        // Predicated region
        $region17: #{tpu_custom_call.1} parent=11 // pred_check
          %p127 = pneg %p83
        $region18: #{tpu_custom_call.1} parent=11 // pred_check_branch
          %129 = sbr.rel (%p127) target = $region20
        $region19: #{tpu_custom_call.1} parent=11 // pred_region
          _
        $region20: #{tpu_custom_call.1} parent=11 // pred_fallthru
          _
      $region12: #{tpu_custom_call.1} parent=5 // pred_fallthru
        _
      %p130 = scmp.lt.s32.totalorder %s15, 2
      // Predicated region
      $region21: #{tpu_custom_call.1} parent=5 // pred_check
        %p131 = pneg %p130
      $region22: #{tpu_custom_call.1} parent=5 // pred_check_branch
        %133 = sbr.rel (%p131) target = $region24
      $region23: #{tpu_custom_call.1} parent=5 // pred_region
        // Predicated region
        $region25: #{tpu_custom_call.1} parent=23 // pred_check
          %p134 = pneg %p35
        $region26: #{tpu_custom_call.1} parent=23 // pred_check_branch
          %136 = sbr.rel (%p134) target = $region28
        $region27: #{tpu_custom_call.1} parent=23 // pred_region
          %s137 = sand.u32 %s25, 1
          %s138 = scalar_lea.sflag [#allocation3], %s137
          %s139 = sand.u32 %s25, 1
          %s140 = smul.addr %s139, 128
          %s141 = scalar_lea.vmem [#allocation2], %s140
          %143 = vsyncadd %s138, 0
          %s144 = smul.addr %s15, 16
          %s145 = smul.addr %s144, 8
          %s146 = scalar_lea.hbm %s0, %s145
          %s147 = sshll.u32 %s146, 4
          %s148 = int_to_ptr.hbm [resolvable:$true] %s147
          %s149 = sshll.u32 %s141, 4
          %s150 = int_to_ptr.vmem [resolvable:$true] %s149
          %155 = dma.hbm_to_vmem [thread:$0]  %s148, 2048, %s150, %s138, 256, 256, 16
        $region28: #{tpu_custom_call.1} parent=23 // pred_fallthru
          _
      $region24: #{tpu_custom_call.1} parent=5 // pred_fallthru
        _
      %p156 = scmp.le.s32.totalorder 1, %s15
      %p157 = scmp.lt.s32.totalorder %s15, 3
      %p158 = pnand %p156, %p157
      %p159 = pneg %p158
      // Predicated region
      $region29: #{tpu_custom_call.1} parent=5 // pred_check
        _
      $region30: #{tpu_custom_call.1} parent=5 // pred_check_branch
        %161 = sbr.rel (%p158) target = $region32
      $region31: #{tpu_custom_call.1} parent=5 // pred_region
        %s162 = ssub.s32 %s15, 1
        %s163 = sand.u32 %s28, 1
        %s164 = scalar_lea.sflag [#allocation3], %s163
        %s165 = sand.u32 %s28, 1
        %s166 = smul.addr %s165, 128
        %s167 = scalar_lea.vmem [#allocation2], %s166
        // Predicated region
        $region33: #{tpu_custom_call.1} parent=31 // pred_check
          %p168 = pneg %p41
        $region34: #{tpu_custom_call.1} parent=31 // pred_check_branch
          %170 = sbr.rel (%p168) target = $region36
        $region35: #{tpu_custom_call.1} parent=31 // pred_region
          %172 = dma.done %s164, 2048
        $region36: #{tpu_custom_call.1} parent=31 // pred_fallthru
          _
        %s173 = sand.u32 %s28, 1
        %s174 = scalar_lea.sflag [#allocation3], %s173
        %s175 = sand.u32 %s28, 1
        %s176 = smul.addr %s175, 128
        %s177 = scalar_lea.vmem [#allocation2], %s176
        %p178 = pneg %p41
        %p179 = pneg %p38
        %p180 = pneg %p62
        %p181 = pneg %p59
        %p182 = pneg %p83
        %p183 = pneg %p80
        %p184 = pneg %p109
        %p185 = pneg %p106
        %s186 = sand.u32 %s96, 1
        %s187 = scalar_lea.sflag [#allocation4], %s186
        %s188 = sand.u32 %s96, 1
        %s189 = smul.addr %s188, 128
        %s190 = scalar_lea.vmem [#allocation5], %s189
        %v191 = vld [vmem:[%s167] sm:$0xff]
        %v192 = vld [vmem:[%s167 + $0x8] sm:$0xff]
        %v193 = vld [vmem:[%s167 + $0x10] sm:$0xff]
        %v194 = vld [vmem:[%s167 + $0x18] sm:$0xff]
        %v195 = vld [vmem:[%s167 + $0x20] sm:$0xff]
        %v196 = vld [vmem:[%s167 + $0x28] sm:$0xff]
        %v197 = vld [vmem:[%s167 + $0x30] sm:$0xff]
        %v198 = vld [vmem:[%s167 + $0x38] sm:$0xff]
        %v199 = vld [vmem:[%s167 + $0x40] sm:$0xff]
        %v200 = vld [vmem:[%s167 + $0x48] sm:$0xff]
        %v201 = vld [vmem:[%s167 + $0x50] sm:$0xff]
        %v202 = vld [vmem:[%s167 + $0x58] sm:$0xff]
        %v203 = vld [vmem:[%s167 + $0x60] sm:$0xff]
        %v204 = vld [vmem:[%s167 + $0x68] sm:$0xff]
        %v205 = vld [vmem:[%s167 + $0x70] sm:$0xff]
        %v206 = vld [vmem:[%s167 + $0x78] sm:$0xff]
        %v207 = vadd.f32 %v191, %v192
        %208 = vadd.xlane.f32.xlu0 %v207
        %v209 = vpop.xlane.xlu0 %208
        %v210 = vadd.f32 %v193, %v194
        %211 = vadd.xlane.f32.xlu0 %v210
        %v212 = vpop.xlane.xlu0 %211
        %v213 = vadd.f32 %v195, %v196
        %214 = vadd.xlane.f32.xlu0 %v213
        %v215 = vpop.xlane.xlu0 %214
        %v216 = vadd.f32 %v197, %v198
        %217 = vadd.xlane.f32.xlu0 %v216
        %v218 = vpop.xlane.xlu0 %217
        %v219 = vadd.f32 %v199, %v200
        %220 = vadd.xlane.f32.xlu0 %v219
        %v221 = vpop.xlane.xlu0 %220
        %v222 = vadd.f32 %v201, %v202
        %223 = vadd.xlane.f32.xlu0 %v222
        %v224 = vpop.xlane.xlu0 %223
        %v225 = vadd.f32 %v203, %v204
        %226 = vadd.xlane.f32.xlu0 %v225
        %v227 = vpop.xlane.xlu0 %226
        %v228 = vadd.f32 %v205, %v206
        %229 = vadd.xlane.f32.xlu0 %v228
        %v230 = vpop.xlane.xlu0 %229
        %v231 = vmul.f32 %v209, 0.00390625
        %v232 = vmul.f32 %v212, 0.00390625
        %v233 = vmul.f32 %v215, 0.00390625
        %v234 = vmul.f32 %v218, 0.00390625
        %v235 = vmul.f32 %v221, 0.00390625
        %v236 = vmul.f32 %v224, 0.00390625
        %v237 = vmul.f32 %v227, 0.00390625
        %v238 = vmul.f32 %v230, 0.00390625
        %v239 = vld [vmem:[%s1] sm:$0xff]
        %v240 = vld [vmem:[%s1 + $0x8] sm:$0xff]
        %v241 = vld [vmem:[%s1 + $0x10] sm:$0xff]
        %v242 = vld [vmem:[%s1 + $0x18] sm:$0xff]
        %v243 = vld [vmem:[%s1 + $0x20] sm:$0xff]
        %v244 = vld [vmem:[%s1 + $0x28] sm:$0xff]
        %v245 = vld [vmem:[%s1 + $0x30] sm:$0xff]
        %v246 = vld [vmem:[%s1 + $0x38] sm:$0xff]
        %v247 = vld [vmem:[%s2] sm:$0xff]
        %v248 = vld [vmem:[%s2 + $0x8] sm:$0xff]
        %v249 = vld [vmem:[%s2 + $0x10] sm:$0xff]
        %v250 = vld [vmem:[%s2 + $0x18] sm:$0xff]
        %v251 = vld [vmem:[%s2 + $0x20] sm:$0xff]
        %v252 = vld [vmem:[%s2 + $0x28] sm:$0xff]
        %v253 = vld [vmem:[%s2 + $0x30] sm:$0xff]
        %v254 = vld [vmem:[%s2 + $0x38] sm:$0xff]
        %vm255 = vcmask 523264
        %v257 = vsel %vm255, %v239, 0
        %v260 = vsel %vm255, %v240, 0
        %v263 = vsel %vm255, %v241, 0
        %v266 = vsel %vm255, %v242, 0
        %v269 = vsel %vm255, %v243, 0
        %v272 = vsel %vm255, %v244, 0
        %v275 = vsel %vm255, %v245, 0
        %v278 = vsel %vm255, %v246, 0
        %280 = vmatpush.msra.mxu0 0.0
        %281 = vmatpush.msra.mxu0 0.0
        %282 = vmatpush.msra.mxu0 0.0
        %283 = vmatpush.msra.mxu0 0.0
        %284 = vmatpush.msra.mxu0 0.0
        %285 = vmatpush.msra.mxu0 0.0
        %286 = vmatpush.msra.mxu0 0.0
        %287 = vmatpush.msra.mxu0 0.0
        %288 = vmatpush.msra.mxu0 %v238
        %289 = vmatpush.msra.mxu0 %v237
        %290 = vmatpush.msra.mxu0 %v236
        %291 = vmatpush.msra.mxu0 %v235
        %292 = vmatpush.msra.mxu0 %v234
        %293 = vmatpush.msra.mxu0 %v233
        %294 = vmatpush.msra.mxu0 %v232
        %295 = vmatpush.msra.mxu0 %v231
        %296 = vmatmul.f32.gmra.mxu0 %v257
        %v297 = vpop.f32.mrf.mxu0
        %v298 = vadd.f32 %v247, %v297
        %299 = vmatmul.f32.gmra.mxu0 %v260
        %v300 = vpop.f32.mrf.mxu0
        %v301 = vadd.f32 %v248, %v300
        %302 = vmatmul.f32.gmra.mxu0 %v263
        %v303 = vpop.f32.mrf.mxu0
        %v304 = vadd.f32 %v249, %v303
        %305 = vmatmul.f32.gmra.mxu0 %v266
        %v306 = vpop.f32.mrf.mxu0
        %v307 = vadd.f32 %v250, %v306
        %308 = vmatmul.f32.gmra.mxu0 %v269
        %v309 = vpop.f32.mrf.mxu0
        %v310 = vadd.f32 %v251, %v309
        %311 = vmatmul.f32.gmra.mxu0 %v272
        %v312 = vpop.f32.mrf.mxu0
        %v313 = vadd.f32 %v252, %v312
        %314 = vmatmul.f32.gmra.mxu0 %v275
        %v315 = vpop.f32.mrf.mxu0
        %v316 = vadd.f32 %v253, %v315
        %317 = vmatmul.f32.gmra.mxu0 %v278
        %v318 = vpop.f32.mrf.mxu0
        %v319 = vadd.f32 %v254, %v318
        %320 = vdwg.mxu0
        %v321 = vadd.f32 %v298, 3.0
        %v322 = vadd.f32 %v301, 3.0
        %v323 = vadd.f32 %v304, 3.0
        %v324 = vadd.f32 %v307, 3.0
        %v325 = vadd.f32 %v310, 3.0
        %v326 = vadd.f32 %v313, 3.0
        %v327 = vadd.f32 %v316, 3.0
        %v328 = vadd.f32 %v319, 3.0
        %v329 = vmax.f32 %v321, 0.0
        %v330 = vmax.f32 %v322, 0.0
        %v331 = vmax.f32 %v323, 0.0
        %v332 = vmax.f32 %v324, 0.0
        %v333 = vmax.f32 %v325, 0.0
        %v334 = vmax.f32 %v326, 0.0
        %v335 = vmax.f32 %v327, 0.0
        %v336 = vmax.f32 %v328, 0.0
        %v337 = vmin.f32 %v329, 6.0
        %v338 = vmin.f32 %v330, 6.0
        %v339 = vmin.f32 %v331, 6.0
        %v340 = vmin.f32 %v332, 6.0
        %v341 = vmin.f32 %v333, 6.0
        %v342 = vmin.f32 %v334, 6.0
        %v343 = vmin.f32 %v335, 6.0
        %v344 = vmin.f32 %v336, 6.0
        %v345 = vmul.f32 %v337, 0.16666667
        %v346 = vmul.f32 %v338, 0.16666667
        %v347 = vmul.f32 %v339, 0.16666667
        %v348 = vmul.f32 %v340, 0.16666667
        %v349 = vmul.f32 %v341, 0.16666667
        %v350 = vmul.f32 %v342, 0.16666667
        %v351 = vmul.f32 %v343, 0.16666667
        %v352 = vmul.f32 %v344, 0.16666667
        %354 = vset.pattern.permute.xlu0 0
        %355 = vperm.xlu0 %354, %v345
        %v356 = vpop.permute.xlu0 %355
        %359 = vset.pattern.permute.xlu0 0
        %360 = vperm.xlu0 %359, %v346
        %v361 = vpop.permute.xlu0 %360
        %364 = vset.pattern.permute.xlu0 0
        %365 = vperm.xlu0 %364, %v347
        %v366 = vpop.permute.xlu0 %365
        %369 = vset.pattern.permute.xlu0 0
        %370 = vperm.xlu0 %369, %v348
        %v371 = vpop.permute.xlu0 %370
        %374 = vset.pattern.permute.xlu0 0
        %375 = vperm.xlu0 %374, %v349
        %v376 = vpop.permute.xlu0 %375
        %379 = vset.pattern.permute.xlu0 0
        %380 = vperm.xlu0 %379, %v350
        %v381 = vpop.permute.xlu0 %380
        %384 = vset.pattern.permute.xlu0 0
        %385 = vperm.xlu0 %384, %v351
        %v386 = vpop.permute.xlu0 %385
        %389 = vset.pattern.permute.xlu0 0
        %390 = vperm.xlu0 %389, %v352
        %v391 = vpop.permute.xlu0 %390
        %v393 = vmul.f32 %v191, %v356
        %v394 = vmul.f32 %v192, %v356
        %v395 = vmul.f32 %v193, %v361
        %v396 = vmul.f32 %v194, %v361
        %v397 = vmul.f32 %v195, %v366
        %v398 = vmul.f32 %v196, %v366
        %v399 = vmul.f32 %v197, %v371
        %v400 = vmul.f32 %v198, %v371
        %v401 = vmul.f32 %v199, %v376
        %v402 = vmul.f32 %v200, %v376
        %v403 = vmul.f32 %v201, %v381
        %v404 = vmul.f32 %v202, %v381
        %v405 = vmul.f32 %v203, %v386
        %v406 = vmul.f32 %v204, %v386
        %v407 = vmul.f32 %v205, %v391
        %v408 = vmul.f32 %v206, %v391
        %409 = vst [vmem:[%s190] sm:$0xff] %v393
        %410 = vst [vmem:[%s190 + $0x8] sm:$0xff] %v394
        %411 = vst [vmem:[%s190 + $0x10] sm:$0xff] %v395
        %412 = vst [vmem:[%s190 + $0x18] sm:$0xff] %v396
        %413 = vst [vmem:[%s190 + $0x20] sm:$0xff] %v397
        %414 = vst [vmem:[%s190 + $0x28] sm:$0xff] %v398
        %415 = vst [vmem:[%s190 + $0x30] sm:$0xff] %v399
        %416 = vst [vmem:[%s190 + $0x38] sm:$0xff] %v400
        %417 = vst [vmem:[%s190 + $0x40] sm:$0xff] %v401
        %418 = vst [vmem:[%s190 + $0x48] sm:$0xff] %v402
        %419 = vst [vmem:[%s190 + $0x50] sm:$0xff] %v403
        %420 = vst [vmem:[%s190 + $0x58] sm:$0xff] %v404
        %421 = vst [vmem:[%s190 + $0x60] sm:$0xff] %v405
        %422 = vst [vmem:[%s190 + $0x68] sm:$0xff] %v406
        %423 = vst [vmem:[%s190 + $0x70] sm:$0xff] %v407
        %424 = vst [vmem:[%s190 + $0x78] sm:$0xff] %v408
        %s425 = sand.u32 %s96, 1
        %s426 = scalar_lea.sflag [#allocation4], %s425
        %s427 = sand.u32 %s96, 1
        %s428 = smul.addr %s427, 128
        %s429 = scalar_lea.vmem [#allocation5], %s428
        // Predicated region
        $region37: #{tpu_custom_call.1} parent=31 // pred_check
          %p430 = pneg %p106
        $region38: #{tpu_custom_call.1} parent=31 // pred_check_branch
          %432 = sbr.rel (%p430) target = $region40
        $region39: #{tpu_custom_call.1} parent=31 // pred_region
          %434 = vsyncadd %s426, 0
          %s435 = smul.addr %s20, 16
          %s436 = smul.addr %s435, 8
          %s437 = scalar_lea.hbm %s3, %s436
          %s438 = sshll.u32 %s429, 4
          %s439 = int_to_ptr.vmem [resolvable:$true] %s438
          %s440 = sshll.u32 %s437, 4
          %s441 = int_to_ptr.hbm [resolvable:$true] %s440
          %446 = dma.vmem_to_hbm [thread:$0]  %s439, 2048, %s441, %s426, 256, 256, 16
        $region40: #{tpu_custom_call.1} parent=31 // pred_fallthru
          _
      $region32: #{tpu_custom_call.1} parent=5 // pred_fallthru
        _
      %p447 = scmp.le.s32.totalorder 2, %s15
      // Predicated region
      $region41: #{tpu_custom_call.1} parent=5 // pred_check
        %p448 = pneg %p447
      $region42: #{tpu_custom_call.1} parent=5 // pred_check_branch
        %450 = sbr.rel (%p448) target = $region44
      $region43: #{tpu_custom_call.1} parent=5 // pred_region
        %s451 = ssub.s32 %s15, 2
        // Predicated region
        $region45: #{tpu_custom_call.1} parent=43 // pred_check
          %p452 = pneg %p112
        $region46: #{tpu_custom_call.1} parent=43 // pred_check_branch
          %454 = sbr.rel (%p452) target = $region48
        $region47: #{tpu_custom_call.1} parent=43 // pred_region
          %s455 = sand.u32 %s97, 1
          %s456 = scalar_lea.sflag [#allocation4], %s455
          %s457 = sand.u32 %s97, 1
          %s458 = smul.addr %s457, 128
          %s459 = scalar_lea.vmem [#allocation5], %s458
          %461 = dma.done %s456, 2048
        $region48: #{tpu_custom_call.1} parent=43 // pred_fallthru
          _
      $region44: #{tpu_custom_call.1} parent=5 // pred_fallthru
        _
    $region6: #{tpu_custom_call.1} parent=1 // loop_footer
      %s19 = sadd.s32 1, %s15
    $region7: #{tpu_custom_call.1} parent=1 // loop_footer_branch
      %14 = sbr.rel target = $region3
    $region8: #{tpu_custom_call.1} parent=1 // loop_exit
      _
    %462 = vsyncpa [#allocation3], 1
    %s463 = scalar_lea.sflag [#allocation3], 1
    %464 = vsyncpa %s463, 1
    %465 = vsyncpa [#allocation4], 1
    %s466 = scalar_lea.sflag [#allocation4], 1
    %467 = vsyncpa %s466, 1

</llo_original>
